<compile_context>
chip_gen: v7x
topology: tpu7x:2x2x1
jax: 0.10.0
libtpu: 0.0.40
codegen_flags: <defaults>
</compile_context>

<pallas_src>
import jax
import jax.numpy as jnp
from jax.experimental import pallas as pl
from jax.experimental.pallas import tpu as pltpu


FEAT1, FEAT2 = 5, 10
K = FEAT1 + FEAT2      # 15 real features
KP = K + 1             # +1 constant-1 row carrying the fused bias -> 16 (sublane-aligned)


def mynet_kernel(x_ref, w_ref, o_ref):
    # x_ref: (KP, TB)  features on sublanes, batch on the 128-lane axis
    # w_ref: (KP, 1)   fused weight column = [w1 | w2 | b1+b2]
    # o_ref: (1, TB)   lane-dense output row (unmasked vector stores)
    # VPU multiply (lane-broadcast of the weight column) + XLU sublane reduce.
    o_ref[...] = jnp.sum(x_ref[...] * w_ref[...], axis=0, keepdims=True)


def mynet_forward(x1, x2, w1, b1, w2, b2, *, tb=65536, force_pallas=False):
    """Equivalent of MyNet.forward(x1, x2) -> (B,)."""
    B = x1.shape[0]
    f32 = jnp.float32
    x1 = x1.astype(f32)
    x2 = x2.astype(f32)
    w1v = w1.reshape(FEAT1).astype(f32)
    w2v = w2.reshape(FEAT2).astype(f32)
    b_sum = (jnp.sum(b1) + jnp.sum(b2)).astype(f32)          # fused scalar bias

    # ---- small-batch fast path: pallas launch/pipeline overhead dwarfs the
    # work when the whole slab is under ~1 MiB.  Exact same math.
    if not force_pallas and B * KP * 4 < (1 << 20):
        return x1 @ w1v + x2 @ w2v + b_sum

    # ---- batch-tile selection (lanes) -------------------------------------
    B128 = pl.cdiv(B, 128) * 128                              # lane-aligned batch
    TB = max(128, (min(int(tb), B128) // 128) * 128)          # multiple of 128
    if B128 >= 2 * 128 and TB > B128 // 2:
        # Keep >= 2 grid steps so both v7x TensorCores get work.
        TB = max(128, pl.cdiv(B128 // 2, 128) * 128)
    Bp = pl.cdiv(B, TB) * TB
    n_tiles = Bp // TB

    # ---- one fused layout-prep pass ----------------------------------------
    # Feature-major slab (KP, B): rows = [x1 features | x2 features | 1s],
    # then a single pad on the lane (batch) axis.  Padded lanes produce 0 and
    # are stripped below; padded weights do not exist (KP == 16 exactly).
    x_t = jnp.concatenate([x1.T, x2.T, jnp.ones((1, B), f32)], axis=0)   # (16, B)
    if Bp > B:
        x_t = jnp.pad(x_t, ((0, 0), (0, Bp - B)))                        # (16, Bp)

    w_col = jnp.concatenate([w1v, w2v, b_sum.reshape(1)]).reshape(KP, 1)  # (16, 1)

    out = pl.pallas_call(
        mynet_kernel,
        out_shape=jax.ShapeDtypeStruct((1, Bp), jnp.float32),
        grid=(n_tiles,),
        in_specs=[
            # Batch-tiled, lane-dense input: (16, TB) blocks, double-buffered.
            pl.BlockSpec((KP, TB), lambda i: (0, i)),
            # Weight column: constant block index -> fetched once, reused.
            pl.BlockSpec((KP, 1), lambda i: (0, 0)),
        ],
        out_specs=pl.BlockSpec((1, TB), lambda i: (0, i)),
        compiler_params=pltpu.CompilerParams(
            # Independent batch tiles: shards across both TCs on v7x,
            # harmless sequential loop on v5e/v6e.
            dimension_semantics=("parallel",),
        ),
        cost_estimate=pl.CostEstimate(
            flops=2 * KP * Bp,
            transcendentals=0,
            bytes_accessed=4 * (KP * Bp + KP + Bp),
        ),
    )(x_t, w_col)

    # Strip batch padding; matches torch: sum(dim=1) of (B, 2) -> (B,)
    return out[0, :B]


if __name__ == "__main__":
    key = jax.random.PRNGKey(0)
    k_x1, k_x2, k_w1, k_b1, k_w2, k_b2 = jax.random.split(key, 6)

    B = 2
    x1 = jax.random.normal(k_x1, (B, FEAT1), dtype=jnp.float32)
    x2 = jax.random.normal(k_x2, (B, FEAT2), dtype=jnp.float32)

    # Deterministic synthetic parameters (torch Linear: weight (1, in), bias (1,))
    w1 = jax.random.normal(k_w1, (1, FEAT1), dtype=jnp.float32) * 0.1
    b1 = jax.random.normal(k_b1, (1,), dtype=jnp.float32) * 0.1
    w2 = jax.random.normal(k_w2, (1, FEAT2), dtype=jnp.float32) * 0.1
    b2 = jax.random.normal(k_b2, (1,), dtype=jnp.float32) * 0.1

    fwd = jax.jit(mynet_forward, static_argnames=("tb", "force_pallas"))

    # Pure-JAX reference of the forward semantics.
    ref = ((x1 @ w1.T + b1) + (x2 @ w2.T + b2)).reshape(B)

    # 1) Pallas path at the demo size (forced past the small-B fast path).
    out = fwd(x1, x2, w1, b1, w2, b2, force_pallas=True)
    jax.block_until_ready(out)
    assert out.shape == (B,)
    assert jnp.allclose(out, ref, atol=1e-5), (out, ref)

    # 2) Small-B fast path (what a tiny-batch caller would actually hit).
    out_fast = fwd(x1, x2, w1, b1, w2, b2)
    jax.block_until_ready(out_fast)
    assert jnp.allclose(out_fast, ref, atol=1e-5), (out_fast, ref)

    # 3) Multi-tile Pallas path (grid > 1, lane padding) at a still-small size.
    B2 = 300
    kx1, kx2 = jax.random.split(jax.random.PRNGKey(1), 2)
    y1 = jax.random.normal(kx1, (B2, FEAT1), dtype=jnp.float32)
    y2 = jax.random.normal(kx2, (B2, FEAT2), dtype=jnp.float32)
    out2 = fwd(y1, y2, w1, b1, w2, b2, force_pallas=True)
    jax.block_until_ready(out2)
    ref2 = ((y1 @ w1.T + b1) + (y2 @ w2.T + b2)).reshape(B2)
    assert out2.shape == (B2,)
    assert jnp.allclose(out2, ref2, atol=1e-5)

    print("KERNEL_OK")
</pallas_src>

<mosaic_0001>
module attributes {stable_mosaic.version = 11 : i64} {
  func.func @mynet_kernel(%arg0: i32, %arg1: memref<16x128xf32, #tpu.memory_space<vmem>>, %arg2: memref<16x1xf32, #tpu.memory_space<vmem>>, %arg3: memref<1x128xf32, #tpu.memory_space<vmem>>) attributes {dimension_semantics = [#tpu.dimension_semantics<parallel>], iteration_bounds = array<i64: 1>, scalar_prefetch = 0 : i64, scratch_operands = 0 : i64, tpu.core_type = #tpu.core_type<tc>, window_params = [{transform_indices = @transform_0, window_bounds = array<i64: 16, 128>}, {pipeline_mode = #tpu.pipeline_mode<synchronous>, transform_indices = @transform_1, window_bounds = array<i64: 16, 1>}, {transform_indices = @transform_2, window_bounds = array<i64: 1, 128>}]} {
    %c0 = arith.constant 0 : index
    %c0_0 = arith.constant 0 : index
    %0 = vector.load %arg1[%c0, %c0_0] : memref<16x128xf32, #tpu.memory_space<vmem>>, vector<16x128xf32>
    %c0_1 = arith.constant 0 : index
    %c0_2 = arith.constant 0 : index
    %1 = vector.load %arg2[%c0_1, %c0_2] : memref<16x1xf32, #tpu.memory_space<vmem>>, vector<16x1xf32>
    %2 = vector.broadcast %1 : vector<16x1xf32> to vector<16x128xf32>
    %3 = arith.mulf %0, %2 : vector<16x128xf32>
    %cst = arith.constant dense<0.000000e+00> : vector<128xf32>
    %4 = vector.multi_reduction <add>, %3, %cst [0] : vector<16x128xf32> to vector<128xf32>
    %5 = vector.shape_cast %4 : vector<128xf32> to vector<1x128xf32>
    %c0_3 = arith.constant 0 : index
    %c0_4 = arith.constant 0 : index
    %6 = vector.load %arg3[%c0_3, %c0_4] : memref<1x128xf32, #tpu.memory_space<vmem>>, vector<1x128xf32>
    tpu.vector_store %arg3[%c0_3, %c0_4], %5 {strides = array<i32>} : memref<1x128xf32, #tpu.memory_space<vmem>>, vector<1x128xf32>,
    return
  }
  func.func @transform_0(%arg0: i32) -> (i32, i32) {
    %c0_i32 = arith.constant 0 : i32
    %c0_i32_0 = arith.constant 0 : i32
    return %c0_i32, %arg0 : i32, i32
  }
  func.func @transform_1(%arg0: i32) -> (i32, i32) {
    %c0_i32 = arith.constant 0 : i32
    %c0_i32_0 = arith.constant 0 : i32
    %c0_i32_1 = arith.constant 0 : i32
    return %c0_i32, %c0_i32_0 : i32, i32
  }
  func.func @transform_2(%arg0: i32) -> (i32, i32) {
    %c0_i32 = arith.constant 0 : i32
    %c0_i32_0 = arith.constant 0 : i32
    return %c0_i32, %arg0 : i32, i32
  }
}

</mosaic_0001>

<llo_original>
// kernel: mynet_forward.1
$region0: #{mynet_forward.1}
  #allocation0 [shape = 'u32[]', space=smem, size = 0x4, offset = 0x4, fixed_abs, tag = 'smem constant byte address 0x4 - core index']
  #allocation1 [shape = 'u32[144,128]{1,0:T(1,128)}', space=vmem, size = 0x12000, scoped, tag = 'internal scratch']
  %s0 = inlined_call_operand.vmem [shape: f32[16,128], index: 0, kind: input, shape index: {}]
  %s1 = inlined_call_operand.vmem [shape: f32[16,1], index: 1, kind: input, shape index: {}]
  %s2 = inlined_call_operand.vmem [shape: f32[1,128], index: 2, kind: output, shape index: {}]
  %s3 = sld [smem:[#allocation0]]
  $region18: #{mynet_forward.1} parent=0
    _
  %s5 = ssub.s32 1, %s3
  %s6 = scalar_select 0, %s5, %s3
  // Predicated region
  $region2: #{mynet_forward.1} parent=0 // pred_check
    _
  $region3: #{mynet_forward.1} parent=0 // pred_check_branch
    %8 = sbr.rel (0) target = $region5
  $region4: #{mynet_forward.1} parent=0 // pred_region
    _
  $region5: #{mynet_forward.1} parent=0 // pred_fallthru
    _
  // Predicated region
  $region6: #{mynet_forward.1} parent=0 // pred_check
    _
  $region7: #{mynet_forward.1} parent=0 // pred_check_branch
    %10 = sbr.rel (0) target = $region9
  $region8: #{mynet_forward.1} parent=0 // pred_region
    _
  $region9: #{mynet_forward.1} parent=0 // pred_fallthru
    _
  %v11 = vld [vmem:[%s0] sm:$0xff]
  %v12 = vld [vmem:[%s0 + $0x8] sm:$0xff]
  %v13 = vld [vmem:[%s1] sm:$0xff]
  %v14 = vld [vmem:[%s1 + $0x8] sm:$0xff]
  %16 = vset.pattern.permute.xlu0 0
  %17 = vperm.xlu0 %16, %v13
  %v18 = vpop.permute.xlu0 %17
  %21 = vset.pattern.permute.xlu0 0
  %22 = vperm.xlu0 %21, %v14
  %v23 = vpop.permute.xlu0 %22
  %v25 = vmul.f32 %v11, %v18
  %v26 = vmul.f32 %v12, %v23
  %v27 = vadd.f32 %v25, %v26
  %v28 = vrot.slane %v27, 4
  %v29 = vadd.f32 %v27, %v28
  %v30 = vrot.slane %v29, 2
  %v31 = vadd.f32 %v29, %v30
  %v32 = vrot.slane %v31, 1
  %v33 = vadd.f32 %v31, %v32
  %34 = vst [vmem:[%s2] sm:$0x1] %v33
  // Predicated region
  $region10: #{mynet_forward.1} parent=0 // pred_check
    _
  $region11: #{mynet_forward.1} parent=0 // pred_check_branch
    %36 = sbr.rel (0) target = $region13
  $region12: #{mynet_forward.1} parent=0 // pred_region
    _
  $region13: #{mynet_forward.1} parent=0 // pred_fallthru
    _
  // Predicated region
  $region14: #{mynet_forward.1} parent=0 // pred_check
    _
  $region15: #{mynet_forward.1} parent=0 // pred_check_branch
    %38 = sbr.rel (0) target = $region17
  $region16: #{mynet_forward.1} parent=0 // pred_region
    _
  $region17: #{mynet_forward.1} parent=0 // pred_fallthru
    _

</llo_original>
